<compile_context>
chip_gen: v5e
topology: v5e:2x2
jax: 0.10.0
libtpu: 0.0.40
codegen_flags: <defaults>
</compile_context>

<pallas_src>
import functools

import numpy as np
import jax
import jax.numpy as jnp
from jax import lax
from jax.experimental import pallas as pl
from jax.experimental.pallas import tpu as pltpu

NEG_INF = -1e30          # additive mask bias (finite, safely below any real logit)
_MM_TM = 512
_MM_TK = 512
_MM_TN = 512
_VMEM_LIMIT = None


def _ceil_to(x, m):
    return ((x + m - 1) // m) * m


def _tile_and_pad(size, align, cap):
    p = _ceil_to(max(size, 1), align)
    t = min(cap, p)
    p = _ceil_to(p, t)
    return t, p


def _vmem_limit_bytes():
    """64 MiB on 128-MiB-VMEM parts (v5e/v6e), <=32 MiB on 64-MiB parts (v7x)."""
    global _VMEM_LIMIT
    if _VMEM_LIMIT is None:
        try:
            cap = int(pltpu.get_tpu_info().vmem_capacity_bytes)
            _VMEM_LIMIT = int(min(max(cap // 2, 32 * 1024 * 1024), 64 * 1024 * 1024))
        except Exception:
            _VMEM_LIMIT = 32 * 1024 * 1024
    return _VMEM_LIMIT


# ---------------------------------------------------------------------------
# Tiled, pipelined matmul (all linear projections)
# ---------------------------------------------------------------------------
def _matmul_kernel(x_ref, w_ref, o_ref, acc_ref):
    @pl.when(pl.program_id(2) == 0)
    def _():
        acc_ref[...] = jnp.zeros_like(acc_ref)

    acc_ref[...] += jnp.dot(x_ref[...], w_ref[...],
                            preferred_element_type=jnp.float32)

    @pl.when(pl.program_id(2) == pl.num_programs(2) - 1)
    def _():
        o_ref[...] = acc_ref[...].astype(o_ref.dtype)


def prepare_weight(w):
    """One-time pad (to MXU/tile-aligned shape) + cast to bf16 of a (K, N) weight."""
    K, N = w.shape
    _, Kp = _tile_and_pad(K, 128, _MM_TK)
    _, Np = _tile_and_pad(N, 128, _MM_TN)
    wp = jnp.pad(w, ((0, Kp - K), (0, Np - N))).astype(jnp.bfloat16)
    return wp, K, N


def pallas_matmul(x, prepared_w, *, out_dtype=jnp.float32):
    """x: (..., K) @ prepared bf16 weight -> (..., N). f32 MXU accumulation."""
    wp, K, N = prepared_w
    assert x.shape[-1] == K, (x.shape, K)
    lead = x.shape[:-1]
    M = int(np.prod(lead)) if lead else 1
    Kp, Np = wp.shape

    tm, Mp = _tile_and_pad(M, 8, _MM_TM)
    tk = min(_MM_TK, Kp)
    tn = min(_MM_TN, Np)
    # v7x has 2 TensorCores/chip: avoid a 1x1 "parallel" grid when N can be split.
    if Mp // tm == 1 and Np // tn == 1 and Np % 256 == 0:
        tn = Np // 2

    x2 = x.reshape(M, K)
    if (Mp, Kp) != (M, K):
        x2 = jnp.pad(x2, ((0, Mp - M), (0, Kp - K)))
    xp = x2.astype(jnp.bfloat16)

    out = pl.pallas_call(
        _matmul_kernel,
        out_shape=jax.ShapeDtypeStruct((Mp, Np), out_dtype),
        grid=(Mp // tm, Np // tn, Kp // tk),
        in_specs=[
            pl.BlockSpec((tm, tk), lambda i, j, k: (i, k)),
            pl.BlockSpec((tk, tn), lambda i, j, k: (k, j)),
        ],
        out_specs=pl.BlockSpec((tm, tn), lambda i, j, k: (i, j)),
        scratch_shapes=[pltpu.VMEM((tm, tn), jnp.float32)],
        compiler_params=pltpu.CompilerParams(
            dimension_semantics=("parallel", "parallel", "arbitrary"),
            vmem_limit_bytes=_vmem_limit_bytes(),
        ),
    )(xp, wp)
    return out[:M, :N].reshape(*lead, N)


# ---------------------------------------------------------------------------
# Flash attention kernel (merged-head layout, online softmax)
# ---------------------------------------------------------------------------
def _flash_attn_kernel(*refs, heads, dim_head, n_true, use_mask, use_softclamp,
                       softclamp_value):
    if use_mask:
        q_ref, k_ref, v_ref, bias_ref, o_ref, m_scr, l_scr, acc_scr = refs
    else:
        q_ref, k_ref, v_ref, o_ref, m_scr, l_scr, acc_scr = refs
        bias_ref = None

    kv_i = pl.program_id(2)

    @pl.when(kv_i == 0)
    def _():
        m_scr[...] = jnp.full_like(m_scr, -jnp.inf)
        l_scr[...] = jnp.zeros_like(l_scr)
        acc_scr[...] = jnp.zeros_like(acc_scr)

    q = q_ref[0]            # (tq, heads*dim_head) bf16, scale (and 1/clamp) pre-folded
    k = k_ref[0]            # (tk, heads*dim_head) bf16
    v = v_ref[0]            # (tk, heads*dim_head) bf16
    tk_sz = k.shape[0]

    valid = None
    bias = None
    if use_mask:
        bias = bias_ref[0]                                               # (1, tk) f32
    elif n_true is not None:
        # padding-only path: mask from a static true length, no bias DMA.
        col = kv_i * tk_sz + lax.broadcasted_iota(jnp.int32, (1, tk_sz), 1)
        valid = col < n_true                                             # (1, tk) bool

    for h in range(heads):
        hs, he = h * dim_head, (h + 1) * dim_head
        s = jnp.dot(q[:, hs:he], k[:, hs:he].T,
                    preferred_element_type=jnp.float32)                  # (tq, tk) f32

        if use_softclamp:
            # 1/softclamp_value already folded into q; tanh on bf16 (EUP bf16 on v6e/v7x)
            s = jnp.tanh(s.astype(jnp.bfloat16)).astype(jnp.float32) * softclamp_value
        if bias is not None:
            s = s + bias
        elif valid is not None:
            s = jnp.where(valid, s, NEG_INF)

        m_prev = m_scr[h]                                                # (tq, 1) f32
        m_new = jnp.maximum(m_prev, jnp.max(s, axis=-1, keepdims=True))
        alpha = jnp.exp(m_prev - m_new)
        p = jnp.exp((s - m_new).astype(jnp.bfloat16))                    # bf16 exp, MXU-ready
        l_scr[h] = alpha * l_scr[h] + jnp.sum(p.astype(jnp.float32),
                                              axis=-1, keepdims=True)
        acc_scr[h] = alpha * acc_scr[h] + jnp.dot(p, v[:, hs:he],
                                                  preferred_element_type=jnp.float32)
        m_scr[h] = m_new

    @pl.when(kv_i == pl.num_programs(2) - 1)
    def _():
        for h in range(heads):
            hs, he = h * dim_head, (h + 1) * dim_head
            o_ref[0, :, hs:he] = (
                acc_scr[h] * pl.reciprocal(l_scr[h], approx=True)
            ).astype(o_ref.dtype)


def _flash_attention(q, k, v, key_mask=None, *, heads, dim_head, use_softclamp,
                     softclamp_value, block=256):
    """q/k/v: (b, N, heads*dim_head) bf16, merged-head layout, q pre-scaled.
    Returns (b, N, heads*dim_head) bf16 in merged-head layout."""
    b, N, dim_inner = q.shape
    Np8 = _ceil_to(N, 8)
    t = Np8 if Np8 <= block else block
    N_pad = _ceil_to(N, t)
    pad = N_pad - N
    use_mask = key_mask is not None
    n_true = N if (pad > 0 and not use_mask) else None

    def _pad_seq(x):
        if pad:
            x = jnp.pad(x, ((0, 0), (0, pad), (0, 0)))
        return x.astype(jnp.bfloat16)

    args = [_pad_seq(q), _pad_seq(k), _pad_seq(v)]
    in_specs = [
        pl.BlockSpec((1, t, dim_inner), lambda bi, qi, ki: (bi, qi, 0)),
        pl.BlockSpec((1, t, dim_inner), lambda bi, qi, ki: (bi, ki, 0)),
        pl.BlockSpec((1, t, dim_inner), lambda bi, qi, ki: (bi, ki, 0)),
    ]
    if use_mask:
        km = jnp.pad(key_mask.astype(bool), ((0, 0), (0, pad)),
                     constant_values=False)
        bias = jnp.where(km, 0.0, NEG_INF).astype(jnp.float32)[:, None, :]  # (b,1,N_pad)
        args.append(bias)
        in_specs.append(pl.BlockSpec((1, 1, t), lambda bi, qi, ki: (bi, 0, ki)))

    kernel = functools.partial(
        _flash_attn_kernel,
        heads=heads, dim_head=dim_head, n_true=n_true, use_mask=use_mask,
        use_softclamp=use_softclamp, softclamp_value=float(softclamp_value))

    out = pl.pallas_call(
        kernel,
        out_shape=jax.ShapeDtypeStruct((b, N_pad, dim_inner), jnp.bfloat16),
        grid=(b, N_pad // t, N_pad // t),
        in_specs=in_specs,
        out_specs=pl.BlockSpec((1, t, dim_inner), lambda bi, qi, ki: (bi, qi, 0)),
        scratch_shapes=[
            pltpu.VMEM((heads, t, 1), jnp.float32),        # running max m (per head)
            pltpu.VMEM((heads, t, 1), jnp.float32),        # running denom l (per head)
            pltpu.VMEM((heads, t, dim_head), jnp.float32), # output accumulator
        ],
        compiler_params=pltpu.CompilerParams(
            dimension_semantics=("parallel", "parallel", "arbitrary"),
            vmem_limit_bytes=_vmem_limit_bytes(),
        ),
    )(*args)
    return out[:, :N, :]


# ---------------------------------------------------------------------------
# JointAttention (parameters + forward)
# ---------------------------------------------------------------------------
def init_joint_attention(key, dim_inputs, dim_head, heads):
    dim_inner = dim_head * heads
    params = {"to_qkv": [], "to_out": [], "q_gamma": [], "k_gamma": []}
    for dim in dim_inputs:
        key, k1, k2 = jax.random.split(key, 3)
        params["to_qkv"].append(
            0.02 * jax.random.normal(k1, (dim, dim_inner * 3), jnp.float32))
        params["to_out"].append(
            0.02 * jax.random.normal(k2, (dim_inner, dim), jnp.float32))
        # gamma initialized to ones, exactly like MultiHeadRMSNorm.__init__
        params["q_gamma"].append(jnp.ones((heads, 1, dim_head), jnp.float32))
        params["k_gamma"].append(jnp.ones((heads, 1, dim_head), jnp.float32))
    return params


def prepare_joint_attention_params(params):
    """One-time weight padding + bf16 cast (keeps the per-call pad/cast HBM round
    trip out of the forward hot path)."""
    return {
        "to_qkv": [prepare_weight(w) for w in params["to_qkv"]],
        "to_out": [prepare_weight(w) for w in params["to_out"]],
        "q_gamma": list(params["q_gamma"]),
        "k_gamma": list(params["k_gamma"]),
    }


def _mh_rmsnorm_merged(x, gamma, heads, dim_head, out_scale):
    """MultiHeadRMSNorm on merged-head layout x: (b, n, heads*dim_head) (bf16 in/out)."""
    b, n, _ = x.shape
    xr = x.reshape(b, n, heads, dim_head).astype(jnp.float32)
    inv = lax.rsqrt(jnp.sum(xr * xr, axis=-1, keepdims=True) + 1e-12)
    g = gamma.reshape(1, 1, heads, dim_head).astype(jnp.float32) * out_scale
    return (xr * inv * g).reshape(b, n, heads * dim_head).astype(jnp.bfloat16)


def joint_attention_forward(prepared, inputs, masks=None, *, dim_head, heads,
                            qk_rmsnorm=True, use_softclamp=True,
                            softclamp_value=50.0):
    num = len(inputs)
    seq_lens = [x.shape[1] for x in inputs]
    if masks is None:
        masks = (None,) * num
    dim_inner = heads * dim_head

    scale = float(dim_head) ** -0.5
    # fold the attention scale (and 1/softclamp) into q before the kernel
    q_fold = scale / float(softclamp_value) if use_softclamp else scale
    rms_scale = float(dim_head) ** 0.5
    any_mask = any(m is not None for m in masks)

    qs, ks, vs, kms = [], [], [], []
    for x, m, w_qkv, qg, kg in zip(inputs, masks, prepared["to_qkv"],
                                   prepared["q_gamma"], prepared["k_gamma"]):
        b, n = x.shape[0], x.shape[1]
        qkv = pallas_matmul(x, w_qkv, out_dtype=jnp.bfloat16)      # (b, n, 3*h*d) bf16
        # column order of to_qkv is (qkv, h, d) -> contiguous merged-head slices, no transpose
        q = qkv[..., 0 * dim_inner:1 * dim_inner]
        k = qkv[..., 1 * dim_inner:2 * dim_inner]
        v = qkv[..., 2 * dim_inner:3 * dim_inner]
        if qk_rmsnorm:
            q = _mh_rmsnorm_merged(q, qg, heads, dim_head, rms_scale * q_fold)
            k = _mh_rmsnorm_merged(k, kg, heads, dim_head, rms_scale)
        else:
            q = (q.astype(jnp.float32) * q_fold).astype(jnp.bfloat16)
        qs.append(q); ks.append(k); vs.append(v)
        if any_mask:
            kms.append(jnp.ones((b, n), bool) if m is None else m.astype(bool))

    # pack along the sequence axis ('b * (h d)')
    q = jnp.concatenate(qs, axis=1)
    k = jnp.concatenate(ks, axis=1)
    v = jnp.concatenate(vs, axis=1)
    key_mask = jnp.concatenate(kms, axis=1) if any_mask else None

    merged = _flash_attention(q, k, v, key_mask, heads=heads, dim_head=dim_head,
                              use_softclamp=use_softclamp,
                              softclamp_value=softclamp_value)      # (b, N, h*d) bf16

    # unpack + per-input output projection (flash output is already merged-head)
    all_outs, start = [], 0
    for n, w_out in zip(seq_lens, prepared["to_out"]):
        all_outs.append(pallas_matmul(merged[:, start:start + n], w_out,
                                      out_dtype=jnp.float32))
        start += n
    return tuple(all_outs)


# ---------------------------------------------------------------------------
# Pure-JAX reference (for verification; mask-aware, full f32)
# ---------------------------------------------------------------------------
def reference_forward(params, inputs, masks=None, *, dim_head, heads,
                      qk_rmsnorm=True, use_softclamp=True, softclamp_value=50.0):
    b = inputs[0].shape[0]
    seq_lens = [x.shape[1] for x in inputs]
    num = len(inputs)
    if masks is None:
        masks = (None,) * num
    qs, ks, vs, kms = [], [], [], []
    for x, m, w_qkv, qg, kg in zip(inputs, masks, params["to_qkv"],
                                   params["q_gamma"], params["k_gamma"]):
        n = x.shape[1]
        qkv = (x @ w_qkv).reshape(b, n, 3, heads, dim_head)
        qkv = jnp.transpose(qkv, (2, 0, 3, 1, 4))
        q, k, v = qkv[0], qkv[1], qkv[2]
        if qk_rmsnorm:
            def rms(t, g):
                norm = jnp.sqrt(jnp.sum(t * t, axis=-1, keepdims=True))
                return t / jnp.maximum(norm, 1e-12) * g[None] * (dim_head ** 0.5)
            q = rms(q, qg)
            k = rms(k, kg)
        qs.append(q); ks.append(k); vs.append(v)
        kms.append(jnp.ones((b, n), bool) if m is None else m.astype(bool))
    q = jnp.concatenate(qs, 2); k = jnp.concatenate(ks, 2); v = jnp.concatenate(vs, 2)
    key_mask = jnp.concatenate(kms, 1)
    sim = jnp.einsum('bhqd,bhkd->bhqk', q, k) * (dim_head ** -0.5)
    if use_softclamp:
        sim = jnp.tanh(sim / softclamp_value) * softclamp_value
    sim = jnp.where(key_mask[:, None, None, :], sim, NEG_INF)
    attn = jax.nn.softmax(sim, axis=-1)
    out = jnp.einsum('bhqk,bhkd->bhqd', attn, v)
    merged = jnp.transpose(out, (0, 2, 1, 3)).reshape(b, -1, heads * dim_head)
    outs, start = [], 0
    for n, w_out in zip(seq_lens, params["to_out"]):
        outs.append(merged[:, start:start + n] @ w_out)
        start += n
    return tuple(outs)


# ---------------------------------------------------------------------------
if __name__ == "__main__":
    B = 2
    heads = 2
    dim_head = 16
    dim_inputs = (32, 16)

    key = jax.random.PRNGKey(0)
    key, kp = jax.random.split(key)
    params = init_joint_attention(kp, dim_inputs, dim_head, heads)
    prepared = prepare_joint_attention_params(params)   # one-time pad + bf16 cast

    def run_case(case_key, seq_lens, masks, qk_rmsnorm, use_softclamp):
        ks = jax.random.split(case_key, len(seq_lens))
        inputs = tuple(
            jax.random.normal(ks[i], (B, seq_lens[i], dim_inputs[i]), jnp.float32)
            for i in range(len(seq_lens)))
        outs = joint_attention_forward(
            prepared, inputs, masks, dim_head=dim_head, heads=heads,
            qk_rmsnorm=qk_rmsnorm, use_softclamp=use_softclamp,
            softclamp_value=50.0)
        outs = jax.block_until_ready(outs)
        refs = reference_forward(
            params, inputs, masks, dim_head=dim_head, heads=heads,
            qk_rmsnorm=qk_rmsnorm, use_softclamp=use_softclamp,
            softclamp_value=50.0)
        for o, r in zip(outs, refs):
            assert o.shape == r.shape, (o.shape, r.shape)
            np.testing.assert_allclose(np.asarray(o), np.asarray(r),
                                       atol=8e-3, rtol=3e-2)

    key, kc1, kc2, kc3, km1, km2 = jax.random.split(key, 6)

    # Case 1: joint length 12 (padded to 16 inside the kernel -> static in-kernel pad mask).
    run_case(kc1, (8, 4), None, qk_rmsnorm=True, use_softclamp=True)

    # Case 2: explicit key masks (always keep position 0 so no row is fully masked).
    m1 = jax.random.bernoulli(km1, 0.7, (B, 8)).at[:, 0].set(True)
    m2 = jax.random.bernoulli(km2, 0.7, (B, 4)).at[:, 0].set(True)
    run_case(kc2, (8, 4), (m1, m2), qk_rmsnorm=True, use_softclamp=True)

    # Case 3: joint length 16 (no padding), no mask, no rmsnorm, no softclamp
    #         -> exercises the fully mask-free / clamp-free kernel path.
    run_case(kc3, (8, 8), None, qk_rmsnorm=False, use_softclamp=False)

    print("KERNEL_OK")
</pallas_src>

<mosaic_0001>
module attributes {stable_mosaic.version = 11 : i64} {
  func.func @_matmul_kernel(%arg0: i32, %arg1: i32, %arg2: i32, %arg3: memref<16x128xbf16, #tpu.memory_space<vmem>>, %arg4: memref<128x128xbf16, #tpu.memory_space<vmem>>, %arg5: memref<16x128xbf16, #tpu.memory_space<vmem>>, %arg6: memref<16x128xf32, #tpu.memory_space<vmem>>) attributes {dimension_semantics = [#tpu.dimension_semantics<parallel>, #tpu.dimension_semantics<parallel>, #tpu.dimension_semantics<arbitrary>], iteration_bounds = array<i64: 1, 1, 1>, scalar_prefetch = 0 : i64, scratch_operands = 1 : i64, tpu.core_type = #tpu.core_type<tc>, window_params = [{transform_indices = @transform_0, window_bounds = array<i64: 16, 128>}, {transform_indices = @transform_1, window_bounds = array<i64: 128, 128>}, {transform_indices = @transform_2, window_bounds = array<i64: 16, 128>}]} {
    %c0_i32 = arith.constant 0 : i32
    %0 = arith.cmpi eq, %arg2, %c0_i32 : i32
    %1 = arith.extui %0 : i1 to i32
    %c0_i32_0 = arith.constant 0 : i32
    %2 = arith.cmpi ne, %1, %c0_i32_0 : i32
    scf.if %2 {
      %cst_10 = arith.constant 0.000000e+00 : f32
      %12 = vector.broadcast %cst_10 : f32 to vector<16x128xf32>
      %c0_11 = arith.constant 0 : index
      %c0_12 = arith.constant 0 : index
      %13 = vector.load %arg6[%c0_11, %c0_12] : memref<16x128xf32, #tpu.memory_space<vmem>>, vector<16x128xf32>
      tpu.vector_store %arg6[%c0_11, %c0_12], %12 {strides = array<i32>} : memref<16x128xf32, #tpu.memory_space<vmem>>, vector<16x128xf32>,
    } else {
    }
    %c0 = arith.constant 0 : index
    %c0_1 = arith.constant 0 : index
    %3 = vector.load %arg6[%c0, %c0_1] : memref<16x128xf32, #tpu.memory_space<vmem>>, vector<16x128xf32>
    %c0_2 = arith.constant 0 : index
    %c0_3 = arith.constant 0 : index
    %4 = vector.load %arg3[%c0_2, %c0_3] : memref<16x128xbf16, #tpu.memory_space<vmem>>, vector<16x128xbf16>
    %c0_4 = arith.constant 0 : index
    %c0_5 = arith.constant 0 : index
    %5 = vector.load %arg4[%c0_4, %c0_5] : memref<128x128xbf16, #tpu.memory_space<vmem>>, vector<128x128xbf16>
    %cst = arith.constant dense<0.000000e+00> : vector<16x128xf32>
    %6 = tpu.matmul %4, %5, %cst {dimension_numbers = #tpu.dot_dimension_numbers<[1], [0], [0], [1], [0, 0, 1, 1], [], []>} : vector<16x128xbf16>, vector<128x128xbf16>, vector<16x128xf32> -> vector<16x128xf32>
    %7 = arith.addf %3, %6 : vector<16x128xf32>
    %c0_6 = arith.constant 0 : index
    %c0_7 = arith.constant 0 : index
    %8 = vector.load %arg6[%c0_6, %c0_7] : memref<16x128xf32, #tpu.memory_space<vmem>>, vector<16x128xf32>
    tpu.vector_store %arg6[%c0_6, %c0_7], %7 {strides = array<i32>} : memref<16x128xf32, #tpu.memory_space<vmem>>, vector<16x128xf32>,
    %c0_i32_8 = arith.constant 0 : i32
    %9 = arith.cmpi eq, %arg2, %c0_i32_8 : i32
    %10 = arith.extui %9 : i1 to i32
    %c0_i32_9 = arith.constant 0 : i32
    %11 = arith.cmpi ne, %10, %c0_i32_9 : i32
    scf.if %11 {
      %c0_10 = arith.constant 0 : index
      %c0_11 = arith.constant 0 : index
      %12 = vector.load %arg6[%c0_10, %c0_11] : memref<16x128xf32, #tpu.memory_space<vmem>>, vector<16x128xf32>
      %13 = arith.truncf %12 : vector<16x128xf32> to vector<16x128xbf16>
      %c0_12 = arith.constant 0 : index
      %c0_13 = arith.constant 0 : index
      %14 = vector.load %arg5[%c0_12, %c0_13] : memref<16x128xbf16, #tpu.memory_space<vmem>>, vector<16x128xbf16>
      tpu.vector_store %arg5[%c0_12, %c0_13], %13 {strides = array<i32>} : memref<16x128xbf16, #tpu.memory_space<vmem>>, vector<16x128xbf16>,
    } else {
    }
    return
  }
  func.func @transform_0(%arg0: i32, %arg1: i32, %arg2: i32) -> (i32, i32) {
    %c0_i32 = arith.constant 0 : i32
    return %arg0, %arg2 : i32, i32
  }
  func.func @transform_1(%arg0: i32, %arg1: i32, %arg2: i32) -> (i32, i32) {
    %c0_i32 = arith.constant 0 : i32
    return %arg2, %arg1 : i32, i32
  }
  func.func @transform_2(%arg0: i32, %arg1: i32, %arg2: i32) -> (i32, i32) {
    %c0_i32 = arith.constant 0 : i32
    return %arg0, %arg1 : i32, i32
  }
}

</mosaic_0001>

<llo_original>
// kernel: tpu_custom_call.1
$region0: #{tpu_custom_call.1}
  #allocation0 [shape = 'u32[]', space=smem, size = 0x4, offset = 0x4, fixed_abs, tag = 'smem constant byte address 0x4 - core index']
  #allocation1 [shape = 'u32[72,128]{1,0:T(1,128)}', space=vmem, size = 0x9000, scoped, tag = 'internal scratch']
  #allocation2 [shape = 'f32[16,128]{1,0:T(8,128)}', space=vmem, size = 0x2000, scoped, tag = 'scratch operand']
  %s0 = inlined_call_operand.hbm [shape: bf16[16,128], index: 0, kind: input, shape index: {}]
  %s1 = inlined_call_operand.hbm [shape: bf16[128,128], index: 1, kind: input, shape index: {}]
  %s2 = inlined_call_operand.hbm [shape: bf16[16,128], index: 2, kind: output, shape index: {}]
  %s3 = sld [smem:[#allocation0]]
  $region34: #{tpu_custom_call.1} parent=0
    _
  %s5 = ssub.s32 1, %s3
  %s6 = scalar_select 0, %s5, %s3
  $region1: #{tpu_custom_call.1} parent=0
    #allocation3 [shape = 'u8[4096]{0}', space=vmem, size = 0x1000, scoped, tag = 'input window, operand 0, single buffered']
    #allocation4 [shape = 's32[1]{0}', space=sflag, size = 0x4, scoped, tag = 'scoped memory for tpu_custom_call.1']
    #allocation5 [shape = 's32[1]{0}', space=sflag, size = 0x4, scoped, tag = 'scoped memory for tpu_custom_call.1']
    #allocation6 [shape = 'u8[32768]{0}', space=vmem, size = 0x8000, scoped, tag = 'input window, operand 1, single buffered']
    #allocation7 [shape = 's32[1]{0}', space=sflag, size = 0x4, scoped, tag = 'scoped memory for tpu_custom_call.1']
    #allocation8 [shape = 'u8[4096]{0}', space=vmem, size = 0x1000, scoped, tag = 'output window, operand 0, single buffered']
    %7 = vsyncpa [#allocation4], 0
    %8 = vsyncpa [#allocation7], 0
    %9 = vsyncpa [#allocation5], 0
    // Predicated region
    $region2: #{tpu_custom_call.1} parent=1 // pred_check
      _
    $region3: #{tpu_custom_call.1} parent=1 // pred_check_branch
      %11 = sbr.rel (0) target = $region5
    $region4: #{tpu_custom_call.1} parent=1 // pred_region
      %13 = vsyncadd [#allocation4], 0
      %s14 = sshll.u32 %s0, 4
      %s15 = int_to_ptr.hbm [resolvable:$true] %s14
      %s16 = sshll.u32 [#allocation3], 4
      %s17 = int_to_ptr.vmem [resolvable:$true] %s16
      %22 = dma.hbm_to_vmem [thread:$0]  %s15, 128, %s17, [#allocation4], 64, 64, 4
    $region5: #{tpu_custom_call.1} parent=1 // pred_fallthru
      _
    // Predicated region
    $region6: #{tpu_custom_call.1} parent=1 // pred_check
      _
    $region7: #{tpu_custom_call.1} parent=1 // pred_check_branch
      %24 = sbr.rel (0) target = $region9
    $region8: #{tpu_custom_call.1} parent=1 // pred_region
      %26 = vsyncadd [#allocation7], 0
      %s27 = sshll.u32 %s1, 4
      %s28 = int_to_ptr.hbm [resolvable:$true] %s27
      %s29 = sshll.u32 [#allocation6], 4
      %s30 = int_to_ptr.vmem [resolvable:$true] %s29
      %35 = dma.hbm_to_vmem [thread:$0]  %s28, 1024, %s30, [#allocation7], 64, 64, 4
    $region9: #{tpu_custom_call.1} parent=1 // pred_fallthru
      _
    // Predicated region
    $region10: #{tpu_custom_call.1} parent=1 // pred_check
      _
    $region11: #{tpu_custom_call.1} parent=1 // pred_check_branch
      %37 = sbr.rel (0) target = $region13
    $region12: #{tpu_custom_call.1} parent=1 // pred_region
      %39 = dma.done [#allocation4], 128
    $region13: #{tpu_custom_call.1} parent=1 // pred_fallthru
      _
    // Predicated region
    $region14: #{tpu_custom_call.1} parent=1 // pred_check
      _
    $region15: #{tpu_custom_call.1} parent=1 // pred_check_branch
      %41 = sbr.rel (0) target = $region17
    $region16: #{tpu_custom_call.1} parent=1 // pred_region
      %43 = dma.done [#allocation7], 1024
    $region17: #{tpu_custom_call.1} parent=1 // pred_fallthru
      _
    %p44 = scmp.eq.s32.totalorder 0, 0
    // Predicated region
    $region18: #{tpu_custom_call.1} parent=1 // pred_check
      %p45 = pneg %p44
    $region19: #{tpu_custom_call.1} parent=1 // pred_check_branch
      %47 = sbr.rel (%p45) target = $region21
    $region20: #{tpu_custom_call.1} parent=1 // pred_region
      %48 = vst [vmem:[#allocation2] sm:$0xff] 0.0
      %49 = vst [vmem:[#allocation2 + $0x8] sm:$0xff] 0.0
    $region21: #{tpu_custom_call.1} parent=1 // pred_fallthru
      _
    %v50 = vld [vmem:[#allocation2] sm:$0xff]
    %v51 = vld [vmem:[#allocation2 + $0x8] sm:$0xff]
    %v52 = vld [vmem:[#allocation3] sm:$0xf]
    %v53 = vld [vmem:[#allocation3 + $0x4] sm:$0xf]
    %v54 = vld [vmem:[#allocation6] sm:$0xf]
    %v55 = vld [vmem:[#allocation6 + $0x4] sm:$0xf]
    %v56 = vld [vmem:[#allocation6 + $0x8] sm:$0xf]
    %v57 = vld [vmem:[#allocation6 + $0xc] sm:$0xf]
    %v58 = vld [vmem:[#allocation6 + $0x10] sm:$0xf]
    %v59 = vld [vmem:[#allocation6 + $0x14] sm:$0xf]
    %v60 = vld [vmem:[#allocation6 + $0x18] sm:$0xf]
    %v61 = vld [vmem:[#allocation6 + $0x1c] sm:$0xf]
    %v62 = vld [vmem:[#allocation6 + $0x20] sm:$0xf]
    %v63 = vld [vmem:[#allocation6 + $0x24] sm:$0xf]
    %v64 = vld [vmem:[#allocation6 + $0x28] sm:$0xf]
    %v65 = vld [vmem:[#allocation6 + $0x2c] sm:$0xf]
    %v66 = vld [vmem:[#allocation6 + $0x30] sm:$0xf]
    %v67 = vld [vmem:[#allocation6 + $0x34] sm:$0xf]
    %v68 = vld [vmem:[#allocation6 + $0x38] sm:$0xf]
    %v69 = vld [vmem:[#allocation6 + $0x3c] sm:$0xf]
    %v72 = vunpack.c.l.b16 %v52
    %v73 = vunpack.c.l.b16 %v53
    %v74 = vpack.c.b16 %v73, %v72
    %v92 = vunpack.c.l.b16 %v54
    %v93 = vunpack.c.l.b16 %v55
    %v94 = vunpack.c.l.b16 %v56
    %v95 = vunpack.c.l.b16 %v57
    %v96 = vunpack.c.l.b16 %v58
    %v97 = vunpack.c.l.b16 %v59
    %v98 = vunpack.c.l.b16 %v60
    %v99 = vunpack.c.l.b16 %v61
    %v100 = vunpack.c.l.b16 %v62
    %v101 = vunpack.c.l.b16 %v63
    %v102 = vunpack.c.l.b16 %v64
    %v103 = vunpack.c.l.b16 %v65
    %v104 = vunpack.c.l.b16 %v66
    %v105 = vunpack.c.l.b16 %v67
    %v106 = vunpack.c.l.b16 %v68
    %v107 = vunpack.c.l.b16 %v69
    %v108 = vpack.c.b16 %v93, %v92
    %v109 = vpack.c.b16 %v95, %v94
    %v110 = vpack.c.b16 %v97, %v96
    %v111 = vpack.c.b16 %v99, %v98
    %v112 = vpack.c.b16 %v101, %v100
    %v113 = vpack.c.b16 %v103, %v102
    %v114 = vpack.c.b16 %v105, %v104
    %v115 = vpack.c.b16 %v107, %v106
    %124 = vmatpush.bf16.msra.mxu0 %v115
    %125 = vmatpush.bf16.msra.mxu0 %v114
    %126 = vmatpush.bf16.msra.mxu0 %v113
    %127 = vmatpush.bf16.msra.mxu0 %v112
    %128 = vmatpush.bf16.msra.mxu0 %v111
    %129 = vmatpush.bf16.msra.mxu0 %v110
    %130 = vmatpush.bf16.msra.mxu0 %v109
    %131 = vmatpush.bf16.msra.mxu0 %v108
    %132 = vmatmul.bf16.gmra.mxu0 %v74
    %v133 = vpop.f32.mrf.mxu0
    %v134 = vadd.f32 0.0, %v133
    %v135 = vpop.f32.mrf.mxu0
    %v136 = vadd.f32 0.0, %v135
    %137 = vdwg.mxu0
    %v138 = vadd.f32 %v50, %v134
    %v139 = vadd.f32 %v51, %v136
    %140 = vst [vmem:[#allocation2] sm:$0xff] %v138
    %141 = vst [vmem:[#allocation2 + $0x8] sm:$0xff] %v139
    // Predicated region
    $region22: #{tpu_custom_call.1} parent=1 // pred_check
      %p142 = pneg %p44
    $region23: #{tpu_custom_call.1} parent=1 // pred_check_branch
      %144 = sbr.rel (%p142) target = $region25
    $region24: #{tpu_custom_call.1} parent=1 // pred_region
      %v145 = vld [vmem:[#allocation2] sm:$0xff]
      %v146 = vld [vmem:[#allocation2 + $0x8] sm:$0xff]
      %v147 = vpack.c.bf16 %v145, %v145
      %v148 = vpack.c.bf16 %v146, %v146
      %149 = vst [vmem:[#allocation8] sm:$0xf] %v147
      %150 = vst [vmem:[#allocation8 + $0x4] sm:$0xf] %v148
    $region25: #{tpu_custom_call.1} parent=1 // pred_fallthru
      _
    // Predicated region
    $region26: #{tpu_custom_call.1} parent=1 // pred_check
      _
    $region27: #{tpu_custom_call.1} parent=1 // pred_check_branch
      %152 = sbr.rel (0) target = $region29
    $region28: #{tpu_custom_call.1} parent=1 // pred_region
      %154 = vsyncadd [#allocation5], 0
      %s155 = sshll.u32 [#allocation8], 4
      %s156 = int_to_ptr.vmem [resolvable:$true] %s155
      %s157 = sshll.u32 %s2, 4
      %s158 = int_to_ptr.hbm [resolvable:$true] %s157
      %163 = dma.vmem_to_hbm [thread:$0]  %s156, 128, %s158, [#allocation5], 64, 64, 4
    $region29: #{tpu_custom_call.1} parent=1 // pred_fallthru
      _
    // Predicated region
    $region30: #{tpu_custom_call.1} parent=1 // pred_check
      _
    $region31: #{tpu_custom_call.1} parent=1 // pred_check_branch
      %165 = sbr.rel (0) target = $region33
    $region32: #{tpu_custom_call.1} parent=1 // pred_region
      %167 = dma.done [#allocation5], 128
    $region33: #{tpu_custom_call.1} parent=1 // pred_fallthru
      _
    %168 = vsyncpa [#allocation4], 1
    %169 = vsyncpa [#allocation7], 1
    %170 = vsyncpa [#allocation5], 1

</llo_original>
